<compile_context>
chip_gen: v7x
topology: tpu7x:2x2x1
jax: 0.10.0
libtpu: 0.0.40
codegen_flags: <defaults>
</compile_context>

<pallas_src>
import jax
import jax.numpy as jnp
from jax.experimental import pallas as pl
from jax.experimental.pallas import tpu as pltpu


def _linear_kernel(x_ref, w_ref, b_ref, o_ref):
    # x_ref: (TM, K)   w_ref: (K, N)  (pre-transposed)   b_ref: (1, N)
    # o_ref: (TM, N)
    acc = jnp.dot(x_ref[...], w_ref[...], preferred_element_type=jnp.float32)
    o_ref[...] = (acc + b_ref[...]).astype(o_ref.dtype)


def _round_up(x, m):
    return (x + m - 1) // m * m


def _default_tile_cap():
    """Per-generation cap on the M tile so double-buffered VMEM fits the
    default scoped-VMEM limit (v5e: 16 MiB, v6e/v7x: 32 MiB)."""
    try:
        kind = jax.devices()[0].device_kind.lower()
    except Exception:
        kind = ""
    if "v5 lite" in kind or "v5e" in kind or "v5litepod" in kind:
        return 2048   # padded x tile 2048x256x4 = 2 MiB; x2 bufs + out ≈ 6 MiB
    return 8192       # v6e / v7x: ~24 MiB double-buffered, fits 32 MiB default


def _choose_tile_m(M, requested):
    if requested is not None:
        tm = max(8, _round_up(int(requested), 8))
        return min(tm, _round_up(M, 8))
    cap = _default_tile_cap()
    # Target >= 8 grid steps (>= 4 per TC on v7x megacore) but never tiles
    # smaller than 512 rows; keep tile a multiple of 8 sublanes.
    tm = min(cap, max(512, _round_up(pl.cdiv(M, 8), 8)))
    return min(tm, _round_up(M, 8))


_SMALL_M_CUTOFF = 512  # below this a single un-pipelined invocation is fine


def permute_linear_permute(x1, weight, bias, *, tile_m=None):
    """Equivalent of x1.permute(1,0,2) -> F.linear(., W, b) -> .permute(1,0,2).

    x1: (S, B, K), weight: (N, K) (PyTorch layout), bias: (N,) -> (S, B, N)
    """
    S, B, K = x1.shape
    N = weight.shape[0]
    M = S * B

    x2d = x1.reshape(M, K)
    w_kn = weight.T                      # (K, N): MXU gets contraction directly
    b2d = bias.reshape(1, N)

    itemsize = jnp.dtype(x1.dtype).itemsize
    cost = pl.CostEstimate(
        flops=2 * M * K * N,
        transcendentals=0,
        bytes_accessed=(M * K + M * N + K * N + N) * itemsize,
    )

    small_cutoff = _SMALL_M_CUTOFF if tile_m is None else int(tile_m)

    if M <= small_cutoff:
        # Truly tiny M: no grid, no pipelining machinery; whole operands are
        # VMEM-resident and the kernel body runs exactly once.
        out2d = pl.pallas_call(
            _linear_kernel,
            out_shape=jax.ShapeDtypeStruct((M, N), x1.dtype),
            in_specs=[
                pl.BlockSpec(memory_space=pltpu.MemorySpace.VMEM),
                pl.BlockSpec(memory_space=pltpu.MemorySpace.VMEM),
                pl.BlockSpec(memory_space=pltpu.MemorySpace.VMEM),
            ],
            out_specs=pl.BlockSpec(memory_space=pltpu.MemorySpace.VMEM),
            cost_estimate=cost,
        )(x2d, w_kn, b2d)
    else:
        # Stream large activation tiles over M; keep the 16 KB weight and the
        # bias pinned in VMEM (index_map returns (0, 0) every step).  M axis is
        # "parallel" so it shards across TensorCores on v7x megacore.
        tm = _choose_tile_m(M, tile_m)
        grid_m = pl.cdiv(M, tm)
        out2d = pl.pallas_call(
            _linear_kernel,
            out_shape=jax.ShapeDtypeStruct((M, N), x1.dtype),
            grid=(grid_m,),
            in_specs=[
                pl.BlockSpec((tm, K), lambda i: (i, 0)),
                pl.BlockSpec((K, N), lambda i: (0, 0)),
                pl.BlockSpec((1, N), lambda i: (0, 0)),
            ],
            out_specs=pl.BlockSpec((tm, N), lambda i: (i, 0)),
            compiler_params=pltpu.CompilerParams(
                dimension_semantics=("parallel",),
            ),
            cost_estimate=cost,
        )(x2d, w_kn, b2d)

    return out2d.reshape(S, B, N)


def reference(x1, weight, bias):
    # pure-JAX reference reproducing the PyTorch forward exactly
    v1 = jnp.transpose(x1, (1, 0, 2))
    v2 = jnp.einsum("bsk,nk->bsn", v1, weight) + bias
    v3 = jnp.transpose(v2, (1, 0, 2))
    return v3


if __name__ == "__main__":
    key = jax.random.PRNGKey(0)
    k_x, k_w, k_b, k_x2, k_x3 = jax.random.split(key, 5)

    K, N = 200, 20  # in_features=200, out_features=20 per the module

    # deterministic init mimicking torch.nn.Linear default (uniform +/- 1/sqrt(K))
    bound = 1.0 / (K ** 0.5)
    weight = jax.random.uniform(k_w, (N, K), minval=-bound, maxval=bound,
                                dtype=jnp.float32)
    bias = jax.random.uniform(k_b, (N,), minval=-bound, maxval=bound,
                              dtype=jnp.float32)

    # ---- small shape (exercises the no-grid path) ----
    S, B = 8, 2
    x1 = jax.random.normal(k_x, (S, B, K), dtype=jnp.float32)
    out = jax.block_until_ready(permute_linear_permute(x1, weight, bias))
    ref = reference(x1, weight, bias)
    assert out.shape == (S, B, N)
    assert jnp.allclose(out, ref, atol=1e-4, rtol=1e-4)

    # ---- M divisible by tile (exercises the M-tiled, weight-resident path) ----
    S2, B2 = 64, 8            # M = 512, tile_m=128 -> grid of 4 full tiles
    x1b = jax.random.normal(k_x2, (S2, B2, K), dtype=jnp.float32)
    out2 = jax.block_until_ready(
        permute_linear_permute(x1b, weight, bias, tile_m=128))
    ref2 = reference(x1b, weight, bias)
    assert out2.shape == (S2, B2, N)
    assert jnp.allclose(out2, ref2, atol=1e-4, rtol=1e-4)

    # ---- ragged M (M % tile_m != 0: masked last tile, reduction only over K) ----
    S3, B3 = 75, 4            # M = 300, tile_m=128 -> 128 + 128 + 44
    x1c = jax.random.normal(k_x3, (S3, B3, K), dtype=jnp.float32)
    out3 = jax.block_until_ready(
        permute_linear_permute(x1c, weight, bias, tile_m=128))
    ref3 = reference(x1c, weight, bias)
    assert out3.shape == (S3, B3, N)
    assert jnp.allclose(out3, ref3, atol=1e-4, rtol=1e-4)

    print("KERNEL_OK")
</pallas_src>

<mosaic_0001>
module attributes {stable_mosaic.version = 11 : i64} {
  func.func @_linear_kernel(%arg0: memref<16x200xf32, #tpu.memory_space<vmem>>, %arg1: memref<200x20xf32, #tpu.memory_space<vmem>>, %arg2: memref<1x20xf32, #tpu.memory_space<vmem>>, %arg3: memref<16x20xf32, #tpu.memory_space<vmem>>) attributes {dimension_semantics = [], scalar_prefetch = 0 : i64, scratch_operands = 0 : i64, tpu.core_type = #tpu.core_type<tc>} {
    %c0 = arith.constant 0 : index
    %c0_0 = arith.constant 0 : index
    %0 = vector.load %arg0[%c0, %c0_0] : memref<16x200xf32, #tpu.memory_space<vmem>>, vector<16x200xf32>
    %c0_1 = arith.constant 0 : index
    %c0_2 = arith.constant 0 : index
    %1 = vector.load %arg1[%c0_1, %c0_2] : memref<200x20xf32, #tpu.memory_space<vmem>>, vector<200x20xf32>
    %cst = arith.constant dense<0.000000e+00> : vector<16x20xf32>
    %2 = tpu.matmul %0, %1, %cst {dimension_numbers = #tpu.dot_dimension_numbers<[1], [0], [0], [1], [0, 0, 1, 1], [], []>} : vector<16x200xf32>, vector<200x20xf32>, vector<16x20xf32> -> vector<16x20xf32>
    %c0_3 = arith.constant 0 : index
    %c0_4 = arith.constant 0 : index
    %3 = vector.load %arg2[%c0_3, %c0_4] : memref<1x20xf32, #tpu.memory_space<vmem>>, vector<1x20xf32>
    %4 = vector.broadcast %3 : vector<1x20xf32> to vector<16x20xf32>
    %5 = arith.addf %2, %4 : vector<16x20xf32>
    %c0_5 = arith.constant 0 : index
    %c0_6 = arith.constant 0 : index
    %6 = vector.load %arg3[%c0_5, %c0_6] : memref<16x20xf32, #tpu.memory_space<vmem>>, vector<16x20xf32>
    tpu.vector_store %arg3[%c0_5, %c0_6], %5 {strides = array<i32>} : memref<16x20xf32, #tpu.memory_space<vmem>>, vector<16x20xf32>,
    return
  }
}

</mosaic_0001>

<llo_original>
// kernel: tpu_custom_call.1
$region0: #{tpu_custom_call.1}
  #allocation0 [shape = 'u32[]', space=smem, size = 0x4, offset = 0x4, fixed_abs, tag = 'smem constant byte address 0x4 - core index']
  #allocation1 [shape = 'u32[144,128]{1,0:T(1,128)}', space=vmem, size = 0x12000, scoped, tag = 'internal scratch']
  %s0 = inlined_call_operand.vmem [shape: f32[16,200], index: 0, kind: input, shape index: {}]
  %s1 = inlined_call_operand.vmem [shape: f32[200,20], index: 1, kind: input, shape index: {}]
  %s2 = inlined_call_operand.vmem [shape: f32[1,20], index: 2, kind: input, shape index: {}]
  %s3 = inlined_call_operand.hbm [shape: f32[16,20], index: 3, kind: output, shape index: {}]
  %s4 = sld [smem:[#allocation0]]
  $region22: #{tpu_custom_call.1} parent=0
    _
  %s6 = ssub.s32 1, %s4
  %s7 = scalar_select 0, %s6, %s4
  $region1: #{tpu_custom_call.1} parent=0
    #allocation2 [shape = 'u8[8192]{0}', space=vmem, size = 0x2000, scoped, tag = 'output window, operand 0, single buffered']
    #allocation3 [shape = 's32[1]{0}', space=sflag, size = 0x4, scoped, tag = 'scoped memory for tpu_custom_call.1']
    %8 = vsyncpa [#allocation3], 0
    // Predicated region
    $region2: #{tpu_custom_call.1} parent=1 // pred_check
      _
    $region3: #{tpu_custom_call.1} parent=1 // pred_check_branch
      %10 = sbr.rel (0) target = $region5
    $region4: #{tpu_custom_call.1} parent=1 // pred_region
      _
    $region5: #{tpu_custom_call.1} parent=1 // pred_fallthru
      _
    // Predicated region
    $region6: #{tpu_custom_call.1} parent=1 // pred_check
      _
    $region7: #{tpu_custom_call.1} parent=1 // pred_check_branch
      %12 = sbr.rel (0) target = $region9
    $region8: #{tpu_custom_call.1} parent=1 // pred_region
      _
    $region9: #{tpu_custom_call.1} parent=1 // pred_fallthru
      _
    // Predicated region
    $region10: #{tpu_custom_call.1} parent=1 // pred_check
      _
    $region11: #{tpu_custom_call.1} parent=1 // pred_check_branch
      %14 = sbr.rel (0) target = $region13
    $region12: #{tpu_custom_call.1} parent=1 // pred_region
      _
    $region13: #{tpu_custom_call.1} parent=1 // pred_fallthru
      _
    %v15 = vld [vmem:[%s0] sm:$0xff]
    %v16 = vld [vmem:[%s0 + $0x8] sm:$0xff]
    %v17 = vld [vmem:[%s0 + $0x10] sm:$0xff]
    %v18 = vld [vmem:[%s0 + $0x18] sm:$0xff]
    %v19 = vld [vmem:[%s1] sm:$0xff]
    %v20 = vld [vmem:[%s1 + $0x8] sm:$0xff]
    %v21 = vld [vmem:[%s1 + $0x10] sm:$0xff]
    %v22 = vld [vmem:[%s1 + $0x18] sm:$0xff]
    %v23 = vld [vmem:[%s1 + $0x20] sm:$0xff]
    %v24 = vld [vmem:[%s1 + $0x28] sm:$0xff]
    %v25 = vld [vmem:[%s1 + $0x30] sm:$0xff]
    %v26 = vld [vmem:[%s1 + $0x38] sm:$0xff]
    %v27 = vld [vmem:[%s1 + $0x40] sm:$0xff]
    %v28 = vld [vmem:[%s1 + $0x48] sm:$0xff]
    %v29 = vld [vmem:[%s1 + $0x50] sm:$0xff]
    %v30 = vld [vmem:[%s1 + $0x58] sm:$0xff]
    %v31 = vld [vmem:[%s1 + $0x60] sm:$0xff]
    %v32 = vld [vmem:[%s1 + $0x68] sm:$0xff]
    %v33 = vld [vmem:[%s1 + $0x70] sm:$0xff]
    %v34 = vld [vmem:[%s1 + $0x78] sm:$0xff]
    %v35 = vld [vmem:[%s1 + $0x80] sm:$0xff]
    %v36 = vld [vmem:[%s1 + $0x88] sm:$0xff]
    %v37 = vld [vmem:[%s1 + $0x90] sm:$0xff]
    %v38 = vld [vmem:[%s1 + $0x98] sm:$0xff]
    %v39 = vld [vmem:[%s1 + $0xa0] sm:$0xff]
    %v40 = vld [vmem:[%s1 + $0xa8] sm:$0xff]
    %v41 = vld [vmem:[%s1 + $0xb0] sm:$0xff]
    %v42 = vld [vmem:[%s1 + $0xb8] sm:$0xff]
    %v43 = vld [vmem:[%s1 + $0xc0] sm:$0xff]
    %v44 = vld [vmem:[%s2] sm:$0x1]
    %v46 = vlaneseq
    %v47 = vshrl.u32 %v46, 7
    %v48 = vsub.s32 0, %v47
    %v49 = vrot.slane %v44, %v48
    %vm51 = vcmask 588800
    %v53 = vsel %vm51, %v16, 0
    %v56 = vsel %vm51, %v18, 0
    %58 = vmatprep.subr.mxu0 0.0
    %59 = vmatpush1.msra.mxu0 %v19
    %60 = vmatprep.subr.mxu0 0.0
    %61 = vmatpush1.msra.mxu0 %v20
    %62 = vmatprep.subr.mxu0 0.0
    %63 = vmatpush1.msra.mxu0 %v21
    %64 = vmatprep.subr.mxu0 0.0
    %65 = vmatpush1.msra.mxu0 %v22
    %66 = vmatprep.subr.mxu0 0.0
    %67 = vmatpush1.msra.mxu0 %v23
    %68 = vmatprep.subr.mxu0 0.0
    %69 = vmatpush1.msra.mxu0 %v24
    %70 = vmatprep.subr.mxu0 0.0
    %71 = vmatpush1.msra.mxu0 %v25
    %72 = vmatprep.subr.mxu0 0.0
    %73 = vmatpush1.msra.mxu0 %v26
    %74 = vmatprep.subr.mxu0 0.0
    %75 = vmatpush1.msra.mxu0 %v27
    %76 = vmatprep.subr.mxu0 0.0
    %77 = vmatpush1.msra.mxu0 %v28
    %78 = vmatprep.subr.mxu0 0.0
    %79 = vmatpush1.msra.mxu0 %v29
    %80 = vmatprep.subr.mxu0 0.0
    %81 = vmatpush1.msra.mxu0 %v30
    %82 = vmatprep.subr.mxu0 0.0
    %83 = vmatpush1.msra.mxu0 %v31
    %84 = vmatprep.subr.mxu0 0.0
    %85 = vmatpush1.msra.mxu0 %v32
    %86 = vmatprep.subr.mxu0 0.0
    %87 = vmatpush1.msra.mxu0 %v33
    %88 = vmatprep.subr.mxu0 0.0
    %89 = vmatpush1.msra.mxu0 %v34
    %90 = vmatprep.subr.mxu0 0.0
    %91 = vmatpush1.msra.mxu0 %v35
    %92 = vmatprep.subr.mxu0 0.0
    %93 = vmatpush1.msra.mxu0 %v36
    %94 = vmatprep.subr.mxu0 0.0
    %95 = vmatpush1.msra.mxu0 %v37
    %96 = vmatprep.subr.mxu0 0.0
    %97 = vmatpush1.msra.mxu0 %v38
    %98 = vmatprep.subr.mxu0 0.0
    %99 = vmatpush1.msra.mxu0 %v39
    %100 = vmatprep.subr.mxu0 0.0
    %101 = vmatpush1.msra.mxu0 %v40
    %102 = vmatprep.subr.mxu0 0.0
    %103 = vmatpush1.msra.mxu0 %v41
    %104 = vmatprep.subr.mxu0 0.0
    %105 = vmatpush1.msra.mxu0 %v42
    %106 = vmatprep.subr.mxu0 0.0
    %107 = vmatpush1.msra.mxu0 %v43
    %108 = vmatprep.subr.mxu0 0.0
    %109 = vmatpush1.msra.mxu0 0.0
    %110 = vmatprep.subr.mxu0 0.0
    %111 = vmatpush1.msra.mxu0 0.0
    %112 = vmatprep.subr.mxu0 0.0
    %113 = vmatpush1.msra.mxu0 0.0
    %114 = vmatprep.subr.mxu0 0.0
    %115 = vmatpush1.msra.mxu0 0.0
    %116 = vmatprep.subr.mxu0 0.0
    %117 = vmatpush1.msra.mxu0 0.0
    %118 = vmatprep.subr.mxu0 0.0
    %119 = vmatpush1.msra.mxu0 0.0
    %120 = vmatprep.subr.mxu0 0.0
    %121 = vmatpush1.msra.mxu0 0.0
    %122 = vmatprep.mubr.f32.mxu0 %v53
    %123 = vmatmul.mubr.f32.gmra.mrb[0].mxu0 %v15
    %v124 = vpop.f32.mrb[0].mxu0
    %v125 = vadd.f32 %v49, %v124
    %v126 = vpop.f32.mrb[0].mxu0
    %127 = vmatprep.mubr.f32.mxu0 %v56
    %128 = vmatmul.mubr.f32.gmra.mrb[0].mxu0 %v17
    %v129 = vpop.f32.mrb[0].mxu0
    %v130 = vadd.f32 %v49, %v129
    %v131 = vpop.f32.mrb[0].mxu0
    %132 = vdwg.mxu0
    %vm133 = vcmask 162816
    %134 = vst.msk [vmem:[#allocation2] sm:$0xff] %vm133, %v125
    %135 = vst.msk [vmem:[#allocation2 + $0x8] sm:$0xff] %vm133, %v130
    // Predicated region
    $region14: #{tpu_custom_call.1} parent=1 // pred_check
      _
    $region15: #{tpu_custom_call.1} parent=1 // pred_check_branch
      %137 = sbr.rel (0) target = $region17
    $region16: #{tpu_custom_call.1} parent=1 // pred_region
      %s139 = ssub.s32 256, 256
      %140 = vsyncadd [#allocation3], %s139
      %s141 = sshll.u32 [#allocation2], 4
      %s142 = int_to_ptr.vmem [resolvable:$true] %s141
      %147 = dma.vmem_to_hbm [thread:$0]  %s142, 256, %s3, [#allocation3], 128, 128, 8
    $region17: #{tpu_custom_call.1} parent=1 // pred_fallthru
      _
    // Predicated region
    $region18: #{tpu_custom_call.1} parent=1 // pred_check
      _
    $region19: #{tpu_custom_call.1} parent=1 // pred_check_branch
      %149 = sbr.rel (0) target = $region21
    $region20: #{tpu_custom_call.1} parent=1 // pred_region
      %150 = dma.done [#allocation3], 256
    $region21: #{tpu_custom_call.1} parent=1 // pred_fallthru
      _
    %151 = vsyncpa [#allocation3], 1

</llo_original>
